<compile_context>
chip_gen: v6e
topology: v6e:2x2x1
jax: 0.10.0
libtpu: 0.0.40
codegen_flags: <defaults>
</compile_context>

<pallas_src>
import functools
import math

import jax
import jax.numpy as jnp
from jax.experimental import pallas as pl
from jax.experimental.pallas import tpu as pltpu


# ----------------------------- helpers ---------------------------------


def _gelu(y):
    # TODO(synk): HF BERT uses exact (erf) GELU; tanh approximation used here (f32 elementwise).
    c = math.sqrt(2.0 / math.pi)
    return 0.5 * y * (1.0 + jnp.tanh(c * (y + 0.044715 * y * y * y)))


def _ln(x, g, b):
    mu = jnp.mean(x, axis=-1, keepdims=True)
    var = jnp.mean((x - mu) * (x - mu), axis=-1, keepdims=True)
    return (x - mu) * jax.lax.rsqrt(var + 1e-12) * g + b


@functools.lru_cache(maxsize=None)
def _vmem_limit_bytes():
    # Per-generation scoped-VMEM budget: v5e/v6e have 128 MiB physical, v7x only 64 MiB;
    # leave double-buffer headroom below the physical limit.
    kind = jax.devices()[0].device_kind.lower()
    if "v5" in kind or "v6" in kind:
        return 100 * 1024 * 1024
    return 48 * 1024 * 1024


def _cparams(*dims):
    return pltpu.CompilerParams(dimension_semantics=tuple(dims),
                                vmem_limit_bytes=_vmem_limit_bytes())


def _row_tile(m):
    # 256-aligned tiles keep the 2x256x256 MXU (v6e/v7x) full; cap the tile on small-VMEM
    # (v7x-class) parts.  Toy sizes (< 128 rows) use a single full block.
    cands = (512, 256, 128) if _vmem_limit_bytes() > 64 * 1024 * 1024 else (256, 128)
    for t in cands:
        if m % t == 0:
            return t
    if m < 128:
        return m
    return 128  # caller pads rows up to a multiple of 128 instead of one giant block


def _pad_rows(x, tile):
    m = x.shape[0]
    pad = (-m) % tile
    if pad:
        x = jnp.pad(x, ((0, pad),) + ((0, 0),) * (x.ndim - 1))
    return x, m


# ----------------------------- Pallas kernels ---------------------------------


def _linear_kernel(x_ref, w_ref, b_ref, o_ref):
    # x: f32 (cast to bf16 at the MXU input), w: bf16, f32 accumulation.
    o_ref[...] = (
        jnp.dot(x_ref[...].astype(jnp.bfloat16), w_ref[...],
                preferred_element_type=jnp.float32)
        + b_ref[...]
    )


def _layernorm_kernel(x_ref, g_ref, b_ref, o_ref):
    o_ref[...] = _ln(x_ref[...], g_ref[...], b_ref[...])


def _proj_add_ln_kernel(ctx_ref, w_ref, b_ref, res_ref, g_ref, bln_ref, o_ref):
    # fused: output projection + residual add + LayerNorm
    a = (
        jnp.dot(ctx_ref[...].astype(jnp.bfloat16), w_ref[...],
                preferred_element_type=jnp.float32)
        + b_ref[...]
    )
    o_ref[...] = _ln(a + res_ref[...], g_ref[...], bln_ref[...])


def _ffn_add_ln_kernel(x_ref, w1_ref, b1_ref, w2_ref, b2_ref, g_ref, bln_ref, o_ref):
    # fused: FFN up-proj + GELU + down-proj + residual add + LayerNorm
    x = x_ref[...]
    h = (
        jnp.dot(x.astype(jnp.bfloat16), w1_ref[...], preferred_element_type=jnp.float32)
        + b1_ref[...]
    )
    h = _gelu(h)
    # GELU output goes to the MXU as bf16 -> halves the live intermediate (v7x VMEM budget).
    f = (
        jnp.dot(h.astype(jnp.bfloat16), w2_ref[...], preferred_element_type=jnp.float32)
        + b2_ref[...]
    )
    o_ref[...] = _ln(x + f, g_ref[...], bln_ref[...])


def _head_transform_kernel(x_ref, w_ref, b_ref, g_ref, bln_ref, o_ref):
    # fused: LM-head transform linear + GELU + LayerNorm
    h = (
        jnp.dot(x_ref[...].astype(jnp.bfloat16), w_ref[...],
                preferred_element_type=jnp.float32)
        + b_ref[...]
    )
    o_ref[...] = _ln(_gelu(h), g_ref[...], bln_ref[...])


def _head_scores(qh, kh, km, *, scale, causal, col_offset):
    # qh: (Sq, D) f32, kh: (Tk, D) f32, km: (1, Tk) f32 (1.0 = attend).
    # TODO(synk): D (=32 here, 64 at prod) is far below the MXU contraction width; pack/pad
    # heads at production sizes to raise MXU occupancy.
    s = jnp.einsum("qd,kd->qk", qh.astype(jnp.bfloat16), kh.astype(jnp.bfloat16),
                   preferred_element_type=jnp.float32) * scale
    s = s + (1.0 - km) * (-1e9)
    if causal:
        sq, tk = s.shape
        row = jax.lax.broadcasted_iota(jnp.int32, (sq, tk), 0)
        col = jax.lax.broadcasted_iota(jnp.int32, (sq, tk), 1) + col_offset
        s = jnp.where(col <= row, s, -1e9)
    return s


def _flash_attn_kernel(kmask_ref, q_ref, k_ref, v_ref, o_ref, m_sc, l_sc, acc_sc,
                       *, scale, heads, causal, tile_k):
    # grid = (batch [parallel], kv tiles [arbitrary]); online softmax across kv tiles.
    kv = pl.program_id(1)

    @pl.when(kv == 0)
    def _():
        m_sc[...] = jnp.full(m_sc.shape, -1e30, jnp.float32)
        l_sc[...] = jnp.zeros(l_sc.shape, jnp.float32)
        acc_sc[...] = jnp.zeros(acc_sc.shape, jnp.float32)

    q = q_ref[0]            # (Sq, H) f32  (column block of the fused qkv slab)
    k = k_ref[0]            # (Tk, H)
    v = v_ref[0]            # (Tk, H)
    km = kmask_ref[0]       # (1, Tk)
    sq, hidden = q.shape
    d = hidden // heads
    col_off = kv * tile_k

    m_old = m_sc[...]       # (Sq, heads)
    l_old = l_sc[...]       # (Sq, heads)
    acc_old = acc_sc[...]   # (Sq, H)

    m_cols, l_cols, acc_cols = [], [], []
    for h in range(heads):
        sl = slice(h * d, (h + 1) * d)
        s = _head_scores(q[:, sl], k[:, sl], km, scale=scale, causal=causal,
                         col_offset=col_off)                              # (Sq, Tk)
        m_prev = m_old[:, h:h + 1]
        m_new = jnp.maximum(m_prev, jnp.max(s, axis=-1, keepdims=True))
        alpha = jnp.exp(m_prev - m_new)
        p = jnp.exp(s - m_new)
        l_new = alpha * l_old[:, h:h + 1] + jnp.sum(p, axis=-1, keepdims=True)
        ctx = jnp.einsum("qk,kd->qd", p.astype(jnp.bfloat16),
                         v[:, sl].astype(jnp.bfloat16),
                         preferred_element_type=jnp.float32)              # (Sq, D)
        m_cols.append(m_new)
        l_cols.append(l_new)
        acc_cols.append(alpha * acc_old[:, sl] + ctx)

    m_sc[...] = jnp.concatenate(m_cols, axis=-1)
    l_sc[...] = jnp.concatenate(l_cols, axis=-1)
    acc_sc[...] = jnp.concatenate(acc_cols, axis=-1)

    @pl.when(kv == pl.num_programs(1) - 1)
    def _():
        # Lane-dense (Sq, H) context written once per batch row; exact reciprocal for parity.
        acc = acc_sc[...]
        l_fin = l_sc[...]
        cols = [acc[:, h * d:(h + 1) * d] * pl.reciprocal(l_fin[:, h:h + 1])
                for h in range(heads)]
        o_ref[...] = jnp.concatenate(cols, axis=-1)[None]


def _attn_probs_kernel(kmask_ref, q_ref, k_ref, v_ref, o_ref, p_ref,
                       *, scale, heads, causal):
    # Diagnostic variant (output_attentions=True): full softmax so the probs can be returned.
    q = q_ref[0]
    k = k_ref[0]
    v = v_ref[0]
    km = kmask_ref[0]
    sq, hidden = q.shape
    d = hidden // heads

    ctx_cols, p_heads = [], []
    for h in range(heads):
        sl = slice(h * d, (h + 1) * d)
        s = _head_scores(q[:, sl], k[:, sl], km, scale=scale, causal=causal, col_offset=0)
        m = jnp.max(s, axis=-1, keepdims=True)
        e = jnp.exp(s - m)
        p = e * pl.reciprocal(jnp.sum(e, axis=-1, keepdims=True))
        p_heads.append(p)
        ctx_cols.append(jnp.einsum("qk,kd->qd", p.astype(jnp.bfloat16),
                                   v[:, sl].astype(jnp.bfloat16),
                                   preferred_element_type=jnp.float32))
    o_ref[...] = jnp.concatenate(ctx_cols, axis=-1)[None]
    # Diagnostic-only tensor -> bf16 halves its HBM writeback.
    p_ref[...] = jnp.stack(p_heads, axis=0)[None].astype(jnp.bfloat16)


def _lm_head_loss_kernel(h_ref, w_ref, b_ref, lab_ref,
                         logits_ref, loss_ref, valid_ref,
                         m_sc, l_sc, pick_sc, *, tile_v):
    # Fused LM-head matmul + shifted cross-entropy: grid = (row tiles, vocab tiles).
    # Logits are written once (lane-dense vocab tile) and the loss uses an online LSE,
    # so the (M, V) f32 logits are never re-read from HBM.
    j = pl.program_id(1)

    @pl.when(j == 0)
    def _():
        m_sc[...] = jnp.full(m_sc.shape, -1e30, jnp.float32)
        l_sc[...] = jnp.zeros(l_sc.shape, jnp.float32)
        pick_sc[...] = jnp.zeros(pick_sc.shape, jnp.float32)

    logits = (
        jnp.dot(h_ref[...].astype(jnp.bfloat16), w_ref[...],
                preferred_element_type=jnp.float32)
        + b_ref[...]
    )                                                         # (tm, tv)
    logits_ref[...] = logits

    labels = lab_ref[...]                                     # (tm, 1) int32, -100 = ignore
    col = jax.lax.broadcasted_iota(jnp.int32, logits.shape, 1) + j * tile_v
    pick_sc[...] += jnp.sum(jnp.where(col == labels, logits, 0.0),
                            axis=-1, keepdims=True)

    m_new = jnp.maximum(m_sc[...], jnp.max(logits, axis=-1, keepdims=True))
    l_sc[...] = (l_sc[...] * jnp.exp(m_sc[...] - m_new)
                 + jnp.sum(jnp.exp(logits - m_new), axis=-1, keepdims=True))
    m_sc[...] = m_new

    @pl.when(j == pl.num_programs(1) - 1)
    def _():
        lse = m_sc[...] + jnp.log(l_sc[...])
        valid = (labels != -100).astype(jnp.float32)
        loss_ref[...] = (lse - pick_sc[...]) * valid
        valid_ref[...] = valid


# ----------------------------- kernel wrappers ---------------------------------


def linear(x, w, b):
    M, K = x.shape
    N = w.shape[1]
    tile_m = _row_tile(M)
    xp, _ = _pad_rows(x, tile_m)
    Mp = xp.shape[0]
    out = pl.pallas_call(
        _linear_kernel,
        out_shape=jax.ShapeDtypeStruct((Mp, N), jnp.float32),
        grid=(Mp // tile_m,),
        in_specs=[
            pl.BlockSpec((tile_m, K), lambda i: (i, 0)),
            pl.BlockSpec((K, N), lambda i: (0, 0)),
            pl.BlockSpec((1, N), lambda i: (0, 0)),
        ],
        out_specs=pl.BlockSpec((tile_m, N), lambda i: (i, 0)),
        compiler_params=_cparams("parallel"),
    )(xp, w, b.reshape(1, N))
    return out[:M]


def layernorm(x, gamma, beta):
    M, H = x.shape
    tile_m = _row_tile(M)
    xp, _ = _pad_rows(x, tile_m)
    Mp = xp.shape[0]
    out = pl.pallas_call(
        _layernorm_kernel,
        out_shape=jax.ShapeDtypeStruct((Mp, H), jnp.float32),
        grid=(Mp // tile_m,),
        in_specs=[
            pl.BlockSpec((tile_m, H), lambda i: (i, 0)),
            pl.BlockSpec((1, H), lambda i: (0, 0)),
            pl.BlockSpec((1, H), lambda i: (0, 0)),
        ],
        out_specs=pl.BlockSpec((tile_m, H), lambda i: (i, 0)),
        compiler_params=_cparams("parallel"),
    )(xp, gamma.reshape(1, H), beta.reshape(1, H))
    return out[:M]


def proj_add_ln(ctx, w, b, residual, gamma, beta):
    M, K = ctx.shape
    N = w.shape[1]
    tile_m = _row_tile(M)
    ctxp, _ = _pad_rows(ctx, tile_m)
    resp, _ = _pad_rows(residual, tile_m)
    Mp = ctxp.shape[0]
    out = pl.pallas_call(
        _proj_add_ln_kernel,
        out_shape=jax.ShapeDtypeStruct((Mp, N), jnp.float32),
        grid=(Mp // tile_m,),
        in_specs=[
            pl.BlockSpec((tile_m, K), lambda i: (i, 0)),
            pl.BlockSpec((K, N), lambda i: (0, 0)),
            pl.BlockSpec((1, N), lambda i: (0, 0)),
            pl.BlockSpec((tile_m, N), lambda i: (i, 0)),
            pl.BlockSpec((1, N), lambda i: (0, 0)),
            pl.BlockSpec((1, N), lambda i: (0, 0)),
        ],
        out_specs=pl.BlockSpec((tile_m, N), lambda i: (i, 0)),
        compiler_params=_cparams("parallel"),
    )(ctxp, w, b.reshape(1, N), resp, gamma.reshape(1, N), beta.reshape(1, N))
    return out[:M]


def ffn_add_ln(x, w1, b1, w2, b2, gamma, beta):
    M, H = x.shape
    I = w1.shape[1]
    tile_m = _row_tile(M)
    # TODO(synk): at production I (3-4k) additionally tile the intermediate dim on v7x.
    xp, _ = _pad_rows(x, tile_m)
    Mp = xp.shape[0]
    out = pl.pallas_call(
        _ffn_add_ln_kernel,
        out_shape=jax.ShapeDtypeStruct((Mp, H), jnp.float32),
        grid=(Mp // tile_m,),
        in_specs=[
            pl.BlockSpec((tile_m, H), lambda i: (i, 0)),
            pl.BlockSpec((H, I), lambda i: (0, 0)),
            pl.BlockSpec((1, I), lambda i: (0, 0)),
            pl.BlockSpec((I, H), lambda i: (0, 0)),
            pl.BlockSpec((1, H), lambda i: (0, 0)),
            pl.BlockSpec((1, H), lambda i: (0, 0)),
            pl.BlockSpec((1, H), lambda i: (0, 0)),
        ],
        out_specs=pl.BlockSpec((tile_m, H), lambda i: (i, 0)),
        compiler_params=_cparams("parallel"),
    )(xp, w1, b1.reshape(1, I), w2, b2.reshape(1, H),
      gamma.reshape(1, H), beta.reshape(1, H))
    return out[:M]


def head_transform(x, w, b, gamma, beta):
    M, H = x.shape
    tile_m = _row_tile(M)
    xp, _ = _pad_rows(x, tile_m)
    Mp = xp.shape[0]
    out = pl.pallas_call(
        _head_transform_kernel,
        out_shape=jax.ShapeDtypeStruct((Mp, H), jnp.float32),
        grid=(Mp // tile_m,),
        in_specs=[
            pl.BlockSpec((tile_m, H), lambda i: (i, 0)),
            pl.BlockSpec((H, H), lambda i: (0, 0)),
            pl.BlockSpec((1, H), lambda i: (0, 0)),
            pl.BlockSpec((1, H), lambda i: (0, 0)),
            pl.BlockSpec((1, H), lambda i: (0, 0)),
        ],
        out_specs=pl.BlockSpec((tile_m, H), lambda i: (i, 0)),
        compiler_params=_cparams("parallel"),
    )(xp, w, b.reshape(1, H), gamma.reshape(1, H), beta.reshape(1, H))
    return out[:M]


def attention(q_src, kv_src, kmask, *, hidden, heads, q_col, k_col, v_col,
              causal, want_probs):
    # q_src: (B, Sq, Wq) with Q stored at column block q_col (width = hidden).
    # kv_src: (B, Sk, Wkv) with K / V stored at column blocks k_col / v_col.
    # For self attention q_src and kv_src are the SAME fused qkv slab (no XLA slicing).
    B, Sq, _ = q_src.shape
    _, Sk, _ = kv_src.shape
    D = hidden // heads
    scale = 1.0 / math.sqrt(D)

    if want_probs:
        kernel = functools.partial(_attn_probs_kernel, scale=scale, heads=heads,
                                   causal=causal)
        ctx, probs = pl.pallas_call(
            kernel,
            out_shape=(
                jax.ShapeDtypeStruct((B, Sq, hidden), jnp.float32),
                jax.ShapeDtypeStruct((B, heads, Sq, Sk), jnp.bfloat16),
            ),
            grid=(B,),
            in_specs=[
                pl.BlockSpec((1, 1, Sk), lambda b: (b, 0, 0)),
                pl.BlockSpec((1, Sq, hidden), lambda b: (b, 0, q_col)),
                pl.BlockSpec((1, Sk, hidden), lambda b: (b, 0, k_col)),
                pl.BlockSpec((1, Sk, hidden), lambda b: (b, 0, v_col)),
            ],
            out_specs=(
                pl.BlockSpec((1, Sq, hidden), lambda b: (b, 0, 0)),
                pl.BlockSpec((1, heads, Sq, Sk), lambda b: (b, 0, 0, 0)),
            ),
            compiler_params=_cparams("parallel"),
        )(kmask, q_src, kv_src, kv_src)
        return ctx.reshape(B * Sq, hidden), probs

    # kv tile: full Sk at small sizes, otherwise a 128-multiple for pipelined streaming.
    if Sk % 512 == 0:
        tile_k = 512
    elif Sk % 256 == 0:
        tile_k = 256
    elif Sk % 128 == 0:
        tile_k = 128
    else:
        tile_k = Sk  # TODO(synk): pad Sk to a 128 multiple at production sequence lengths.
    num_kv = Sk // tile_k

    kernel = functools.partial(_flash_attn_kernel, scale=scale, heads=heads,
                               causal=causal, tile_k=tile_k)
    ctx = pl.pallas_call(
        kernel,
        out_shape=jax.ShapeDtypeStruct((B, Sq, hidden), jnp.float32),
        grid=(B, num_kv),
        in_specs=[
            pl.BlockSpec((1, 1, tile_k), lambda b, kv: (b, 0, kv)),
            pl.BlockSpec((1, Sq, hidden), lambda b, kv: (b, 0, q_col)),
            pl.BlockSpec((1, tile_k, hidden), lambda b, kv: (b, kv, k_col)),
            pl.BlockSpec((1, tile_k, hidden), lambda b, kv: (b, kv, v_col)),
        ],
        out_specs=pl.BlockSpec((1, Sq, hidden), lambda b, kv: (b, 0, 0)),
        scratch_shapes=[
            pltpu.VMEM((Sq, heads), jnp.float32),
            pltpu.VMEM((Sq, heads), jnp.float32),
            pltpu.VMEM((Sq, hidden), jnp.float32),
        ],
        compiler_params=_cparams("parallel", "arbitrary"),
    )(kmask, q_src, kv_src, kv_src)
    return ctx.reshape(B * Sq, hidden), None


def lm_head_and_loss(h, w, b, labels):
    # h: (M, H) f32, w: (H, V) bf16, labels: (M,) int32 with -100 = ignore.
    M, H = h.shape
    V = w.shape[1]
    tile_m = _row_tile(M)
    hp, _ = _pad_rows(h, tile_m)
    Mp = hp.shape[0]
    labels = labels.astype(jnp.int32)
    if Mp != M:
        labels = jnp.pad(labels, (0, Mp - M), constant_values=-100)
    labels2d = labels.reshape(Mp, 1)

    tile_v = None
    for t in (512, 256, 128):
        if V % t == 0:
            tile_v = t
            break
    if tile_v is None:
        tile_v = V  # TODO(synk): pad V to a 128 multiple for real (~30k) vocabularies.

    logits, loss_rows, valid_rows = pl.pallas_call(
        functools.partial(_lm_head_loss_kernel, tile_v=tile_v),
        out_shape=(
            jax.ShapeDtypeStruct((Mp, V), jnp.float32),
            jax.ShapeDtypeStruct((Mp, 1), jnp.float32),
            jax.ShapeDtypeStruct((Mp, 1), jnp.float32),
        ),
        grid=(Mp // tile_m, V // tile_v),
        in_specs=[
            pl.BlockSpec((tile_m, H), lambda i, j: (i, 0)),
            pl.BlockSpec((H, tile_v), lambda i, j: (0, j)),
            pl.BlockSpec((1, tile_v), lambda i, j: (0, j)),
            pl.BlockSpec((tile_m, 1), lambda i, j: (i, 0)),
        ],
        out_specs=(
            pl.BlockSpec((tile_m, tile_v), lambda i, j: (i, j)),
            pl.BlockSpec((tile_m, 1), lambda i, j: (i, 0)),
            pl.BlockSpec((tile_m, 1), lambda i, j: (i, 0)),
        ),
        scratch_shapes=[
            pltpu.VMEM((tile_m, 1), jnp.float32),
            pltpu.VMEM((tile_m, 1), jnp.float32),
            pltpu.VMEM((tile_m, 1), jnp.float32),
        ],
        compiler_params=_cparams("parallel", "arbitrary"),
    )(hp, w, b.reshape(1, V), labels2d)

    logits = logits[:M]
    loss = jnp.sum(loss_rows[:M]) / jnp.maximum(jnp.sum(valid_rows[:M]), 1.0)
    return logits, loss


# ----------------------------- parameters ---------------------------------


def init_params(key, vocab, hidden, n_layers, intermediate, max_pos):
    std = 0.02
    wdt = jnp.bfloat16  # matmul weights stored in bf16 (f32 accumulation in kernels)

    def nrm(k, shape, dtype=jnp.float32):
        return (jax.random.normal(k, shape, jnp.float32) * std).astype(dtype)

    def ones(n):
        return jnp.ones((n,), jnp.float32)

    def zeros(n):
        return jnp.zeros((n,), jnp.float32)

    keys = iter(jax.random.split(key, 256))
    p = {
        "word_emb": nrm(next(keys), (vocab, hidden)),
        "pos_emb": nrm(next(keys), (max_pos, hidden)),
        "type_emb": nrm(next(keys), (2, hidden)),
        "emb_ln_g": ones(hidden),
        "emb_ln_b": zeros(hidden),
        "layers": [],
    }
    for _ in range(n_layers):
        layer = {
            "self_qkv_w": nrm(next(keys), (hidden, 3 * hidden), wdt),
            "self_qkv_b": zeros(3 * hidden),
            "self_o_w": nrm(next(keys), (hidden, hidden), wdt),
            "self_o_b": zeros(hidden),
            "self_ln_g": ones(hidden), "self_ln_b": zeros(hidden),
            "cross_q_w": nrm(next(keys), (hidden, hidden), wdt),
            "cross_q_b": zeros(hidden),
            "cross_kv_w": nrm(next(keys), (hidden, 2 * hidden), wdt),
            "cross_kv_b": zeros(2 * hidden),
            "cross_o_w": nrm(next(keys), (hidden, hidden), wdt),
            "cross_o_b": zeros(hidden),
            "cross_ln_g": ones(hidden), "cross_ln_b": zeros(hidden),
            "ffn1_w": nrm(next(keys), (hidden, intermediate), wdt),
            "ffn1_b": zeros(intermediate),
            "ffn2_w": nrm(next(keys), (intermediate, hidden), wdt),
            "ffn2_b": zeros(hidden),
            "ffn_ln_g": ones(hidden), "ffn_ln_b": zeros(hidden),
        }
        p["layers"].append(layer)
    p["head_tr_w"] = nrm(next(keys), (hidden, hidden), wdt)
    p["head_tr_b"] = zeros(hidden)
    p["head_ln_g"] = ones(hidden)
    p["head_ln_b"] = zeros(hidden)
    # TODO(synk): dec_w could be fed as fp8 on v7x for ~2x MXU rate on the vocab projection.
    p["dec_w"] = nrm(next(keys), (hidden, vocab), wdt)
    p["dec_b"] = zeros(vocab)
    return p


# ----------------------------- forward (CustomDecoder.forward) ---------------------------------


def custom_decoder_forward(params, encoder_hidden_states, input_ids,
                           decoder_attention_mask, output_attentions,
                           n_heads=4, bos_token_id=1, pad_token_id=0):
    B, S = input_ids.shape
    _, Senc, _ = encoder_hidden_states.shape
    H = params["word_emb"].shape[1]
    V = params["dec_b"].shape[0]

    # input_ids[:, 0] = bos_token_id ; decoder_targets = masked_fill(pad -> -100)
    input_ids = input_ids.at[:, 0].set(bos_token_id)
    decoder_targets = jnp.where(input_ids == pad_token_id, -100, input_ids)

    # --- embeddings (gathers are XLA glue; LayerNorm is a Pallas kernel) ---
    pos_ids = jnp.arange(S)
    x = (params["word_emb"][input_ids]
         + params["pos_emb"][pos_ids][None, :, :]
         + params["type_emb"][0][None, None, :])
    x = layernorm(x.reshape(B * S, H), params["emb_ln_g"], params["emb_ln_b"])
    # TODO(synk): dropout omitted (deterministic / eval run).

    self_kmask = decoder_attention_mask.astype(jnp.float32).reshape(B, 1, S)
    cross_kmask = jnp.ones((B, 1, Senc), jnp.float32)  # image_atts (encoder_attention_mask)

    enc_flat = encoder_hidden_states.reshape(B * Senc, H)
    attentions, cross_attentions = [], []

    for lyr in params["layers"]:
        # --- self attention: fused QKV projection; attention reads Q/K/V as column
        #     blocks of the qkv slab (no XLA slicing / head-split transposes) ---
        qkv = linear(x, lyr["self_qkv_w"], lyr["self_qkv_b"]).reshape(B, S, 3 * H)
        ctx, probs = attention(qkv, qkv, self_kmask, hidden=H, heads=n_heads,
                               q_col=0, k_col=1, v_col=2, causal=True,
                               want_probs=output_attentions)
        if output_attentions:
            attentions.append(probs)
        x = proj_add_ln(ctx, lyr["self_o_w"], lyr["self_o_b"], x,
                        lyr["self_ln_g"], lyr["self_ln_b"])

        # --- cross attention to encoder_hidden_states (fused K/V projection) ---
        qc = linear(x, lyr["cross_q_w"], lyr["cross_q_b"]).reshape(B, S, H)
        kv = linear(enc_flat, lyr["cross_kv_w"], lyr["cross_kv_b"]).reshape(B, Senc, 2 * H)
        ctx, probs = attention(qc, kv, cross_kmask, hidden=H, heads=n_heads,
                               q_col=0, k_col=0, v_col=1, causal=False,
                               want_probs=output_attentions)
        if output_attentions:
            cross_attentions.append(probs)
        x = proj_add_ln(ctx, lyr["cross_o_w"], lyr["cross_o_b"], x,
                        lyr["cross_ln_g"], lyr["cross_ln_b"])

        # --- feed-forward (fused up + gelu + down + residual + LN) ---
        x = ffn_add_ln(x, lyr["ffn1_w"], lyr["ffn1_b"], lyr["ffn2_w"], lyr["ffn2_b"],
                       lyr["ffn_ln_g"], lyr["ffn_ln_b"])

    # --- LM prediction head: fused transform, then one vocab-tiled kernel that writes the
    #     f32 logits AND computes the shifted causal-LM loss with an online LSE ---
    h = head_transform(x, params["head_tr_w"], params["head_tr_b"],
                       params["head_ln_g"], params["head_ln_b"])

    # shifted labels: row (b, s) predicts token s+1; last position ignored (-100).
    shift_labels = jnp.concatenate(
        [decoder_targets[:, 1:], jnp.full((B, 1), -100, decoder_targets.dtype)],
        axis=1).reshape(B * S)

    logits2d, loss = lm_head_and_loss(h, params["dec_w"], params["dec_b"], shift_labels)
    prediction_scores = logits2d.reshape(B, S, V)

    out = {"loss": loss, "logits": prediction_scores}
    if output_attentions:
        out["attentions"] = tuple(attentions)
        out["cross_attentions"] = tuple(cross_attentions)
    return out


# ----------------------------- main ---------------------------------

if __name__ == "__main__":
    B, S, Senc = 2, 8, 16
    HIDDEN, HEADS, LAYERS, INTER = 128, 4, 2, 512
    VOCAB, MAX_POS = 1024, 64

    key = jax.random.PRNGKey(0)
    k_param, k_enc, k_ids = jax.random.split(key, 3)

    params = init_params(k_param, VOCAB, HIDDEN, LAYERS, INTER, MAX_POS)

    encoder_hidden_states = jax.random.normal(k_enc, (B, Senc, HIDDEN), jnp.float32)
    input_ids = jax.random.randint(k_ids, (B, S), 0, VOCAB, jnp.int32)
    decoder_attention_mask = jnp.ones((B, S), jnp.int32).at[1, -2:].set(0)

    # Path 1: output_attentions=True (full-softmax probs variant, bf16 probs writeback).
    out = custom_decoder_forward(
        params, encoder_hidden_states, input_ids, decoder_attention_mask,
        output_attentions=True, n_heads=HEADS,
    )
    jax.block_until_ready(out["loss"])
    jax.block_until_ready(out["logits"])
    assert out["logits"].shape == (B, S, VOCAB)
    assert out["attentions"][0].shape == (B, HEADS, S, S)
    assert out["cross_attentions"][0].shape == (B, HEADS, S, Senc)
    assert jnp.isfinite(out["loss"])

    # Path 2: output_attentions=False exercises the online-softmax (flash-style) kernel.
    out2 = custom_decoder_forward(
        params, encoder_hidden_states, input_ids, decoder_attention_mask,
        output_attentions=False, n_heads=HEADS,
    )
    jax.block_until_ready(out2["loss"])
    assert out2["logits"].shape == (B, S, VOCAB)
    assert jnp.isfinite(out2["loss"])
    assert bool(jnp.allclose(out2["logits"], out["logits"], atol=0.1, rtol=0.1))

    print("KERNEL_OK")
</pallas_src>

<mosaic_0001>
module attributes {stable_mosaic.version = 11 : i64} {
  func.func @_layernorm_kernel(%arg0: i32, %arg1: memref<16x128xf32, #tpu.memory_space<vmem>>, %arg2: memref<1x128xf32, #tpu.memory_space<vmem>>, %arg3: memref<1x128xf32, #tpu.memory_space<vmem>>, %arg4: memref<16x128xf32, #tpu.memory_space<vmem>>) attributes {dimension_semantics = [#tpu.dimension_semantics<parallel>], iteration_bounds = array<i64: 1>, scalar_prefetch = 0 : i64, scratch_operands = 0 : i64, tpu.core_type = #tpu.core_type<tc>, window_params = [{transform_indices = @transform_0, window_bounds = array<i64: 16, 128>}, {pipeline_mode = #tpu.pipeline_mode<synchronous>, transform_indices = @transform_1, window_bounds = array<i64: 1, 128>}, {pipeline_mode = #tpu.pipeline_mode<synchronous>, transform_indices = @transform_2, window_bounds = array<i64: 1, 128>}, {transform_indices = @transform_3, window_bounds = array<i64: 16, 128>}]} {
    %c0 = arith.constant 0 : index
    %c0_0 = arith.constant 0 : index
    %0 = vector.load %arg1[%c0, %c0_0] : memref<16x128xf32, #tpu.memory_space<vmem>>, vector<16x128xf32>
    %c0_1 = arith.constant 0 : index
    %c0_2 = arith.constant 0 : index
    %1 = vector.load %arg2[%c0_1, %c0_2] : memref<1x128xf32, #tpu.memory_space<vmem>>, vector<1x128xf32>
    %c0_3 = arith.constant 0 : index
    %c0_4 = arith.constant 0 : index
    %2 = vector.load %arg3[%c0_3, %c0_4] : memref<1x128xf32, #tpu.memory_space<vmem>>, vector<1x128xf32>
    %cst = arith.constant dense<0.000000e+00> : vector<16xf32>
    %3 = vector.multi_reduction <add>, %0, %cst [1] : vector<16x128xf32> to vector<16xf32>
    %4 = vector.shape_cast %3 : vector<16xf32> to vector<16x1xf32>
    %cst_5 = arith.constant 1.280000e+02 : f32
    %5 = vector.broadcast %cst_5 : f32 to vector<16x1xf32>
    %6 = arith.divf %4, %5 : vector<16x1xf32>
    %7 = vector.broadcast %6 : vector<16x1xf32> to vector<16x128xf32>
    %8 = arith.subf %0, %7 : vector<16x128xf32>
    %9 = vector.broadcast %6 : vector<16x1xf32> to vector<16x128xf32>
    %10 = arith.subf %0, %9 : vector<16x128xf32>
    %11 = arith.mulf %8, %10 : vector<16x128xf32>
    %cst_6 = arith.constant dense<0.000000e+00> : vector<16xf32>
    %12 = vector.multi_reduction <add>, %11, %cst_6 [1] : vector<16x128xf32> to vector<16xf32>
    %13 = vector.shape_cast %12 : vector<16xf32> to vector<16x1xf32>
    %cst_7 = arith.constant 1.280000e+02 : f32
    %14 = vector.broadcast %cst_7 : f32 to vector<16x1xf32>
    %15 = arith.divf %13, %14 : vector<16x1xf32>
    %16 = vector.broadcast %6 : vector<16x1xf32> to vector<16x128xf32>
    %17 = arith.subf %0, %16 : vector<16x128xf32>
    %cst_8 = arith.constant 9.99999996E-13 : f32
    %18 = vector.broadcast %cst_8 : f32 to vector<16x1xf32>
    %19 = arith.addf %15, %18 : vector<16x1xf32>
    %20 = math.rsqrt %19 : vector<16x1xf32>
    %21 = vector.broadcast %20 : vector<16x1xf32> to vector<16x128xf32>
    %22 = arith.mulf %17, %21 : vector<16x128xf32>
    %23 = vector.broadcast %1 : vector<1x128xf32> to vector<16x128xf32>
    %24 = arith.mulf %22, %23 : vector<16x128xf32>
    %25 = vector.broadcast %2 : vector<1x128xf32> to vector<16x128xf32>
    %26 = arith.addf %24, %25 : vector<16x128xf32>
    %c0_9 = arith.constant 0 : index
    %c0_10 = arith.constant 0 : index
    %27 = vector.load %arg4[%c0_9, %c0_10] : memref<16x128xf32, #tpu.memory_space<vmem>>, vector<16x128xf32>
    tpu.vector_store %arg4[%c0_9, %c0_10], %26 {strides = array<i32>} : memref<16x128xf32, #tpu.memory_space<vmem>>, vector<16x128xf32>,
    return
  }
  func.func @transform_0(%arg0: i32) -> (i32, i32) {
    %c0_i32 = arith.constant 0 : i32
    %c0_i32_0 = arith.constant 0 : i32
    return %arg0, %c0_i32 : i32, i32
  }
  func.func @transform_1(%arg0: i32) -> (i32, i32) {
    %c0_i32 = arith.constant 0 : i32
    %c0_i32_0 = arith.constant 0 : i32
    %c0_i32_1 = arith.constant 0 : i32
    return %c0_i32, %c0_i32_0 : i32, i32
  }
  func.func @transform_2(%arg0: i32) -> (i32, i32) {
    %c0_i32 = arith.constant 0 : i32
    %c0_i32_0 = arith.constant 0 : i32
    %c0_i32_1 = arith.constant 0 : i32
    return %c0_i32, %c0_i32_0 : i32, i32
  }
  func.func @transform_3(%arg0: i32) -> (i32, i32) {
    %c0_i32 = arith.constant 0 : i32
    %c0_i32_0 = arith.constant 0 : i32
    return %arg0, %c0_i32 : i32, i32
  }
}

</mosaic_0001>

<llo_original>
// kernel: tpu_custom_call.1
$region0: #{tpu_custom_call.1}
  #allocation0 [shape = 'u32[]', space=smem, size = 0x4, offset = 0x4, fixed_abs, tag = 'smem constant byte address 0x4 - core index']
  #allocation1 [shape = 'u32[144,128]{1,0:T(1,128)}', space=vmem, size = 0x12000, scoped, tag = 'internal scratch']
  %s0 = inlined_call_operand.hbm [shape: f32[16,128], index: 0, kind: input, shape index: {}]
  %s1 = inlined_call_operand.vmem [shape: f32[1,128], index: 1, kind: input, shape index: {}]
  %s2 = inlined_call_operand.vmem [shape: f32[1,128], index: 2, kind: input, shape index: {}]
  %s3 = inlined_call_operand.hbm [shape: f32[16,128], index: 3, kind: output, shape index: {}]
  %s4 = sld [smem:[#allocation0]]
  $region26: #{tpu_custom_call.1} parent=0
    _
  %s6 = ssub.s32 1, %s4
  %s7 = scalar_select 0, %s6, %s4
  $region1: #{tpu_custom_call.1} parent=0
    #allocation2 [shape = 'u8[8192]{0}', space=vmem, size = 0x2000, scoped, tag = 'input window, operand 0, single buffered']
    #allocation3 [shape = 's32[1]{0}', space=sflag, size = 0x4, scoped, tag = 'scoped memory for tpu_custom_call.1']
    #allocation4 [shape = 's32[1]{0}', space=sflag, size = 0x4, scoped, tag = 'scoped memory for tpu_custom_call.1']
    #allocation5 [shape = 'u8[8192]{0}', space=vmem, size = 0x2000, scoped, tag = 'output window, operand 0, single buffered']
    %8 = vsyncpa [#allocation3], 0
    %9 = vsyncpa [#allocation4], 0
    // Predicated region
    $region2: #{tpu_custom_call.1} parent=1 // pred_check
      _
    $region3: #{tpu_custom_call.1} parent=1 // pred_check_branch
      %11 = sbr.rel (0) target = $region5
    $region4: #{tpu_custom_call.1} parent=1 // pred_region
      %s13 = ssub.s32 256, 256
      %14 = vsyncadd [#allocation3], %s13
      %s15 = sshll.u32 [#allocation2], 4
      %s16 = int_to_ptr.vmem [resolvable:$true] %s15
      %21 = dma.hbm_to_vmem [thread:$0]  %s0, 256, %s16, [#allocation3], 128, 128, 8
    $region5: #{tpu_custom_call.1} parent=1 // pred_fallthru
      _
    // Predicated region
    $region6: #{tpu_custom_call.1} parent=1 // pred_check
      _
    $region7: #{tpu_custom_call.1} parent=1 // pred_check_branch
      %23 = sbr.rel (0) target = $region9
    $region8: #{tpu_custom_call.1} parent=1 // pred_region
      _
    $region9: #{tpu_custom_call.1} parent=1 // pred_fallthru
      _
    // Predicated region
    $region10: #{tpu_custom_call.1} parent=1 // pred_check
      _
    $region11: #{tpu_custom_call.1} parent=1 // pred_check_branch
      %25 = sbr.rel (0) target = $region13
    $region12: #{tpu_custom_call.1} parent=1 // pred_region
      _
    $region13: #{tpu_custom_call.1} parent=1 // pred_fallthru
      _
    // Predicated region
    $region14: #{tpu_custom_call.1} parent=1 // pred_check
      _
    $region15: #{tpu_custom_call.1} parent=1 // pred_check_branch
      %27 = sbr.rel (0) target = $region17
    $region16: #{tpu_custom_call.1} parent=1 // pred_region
      %28 = dma.done [#allocation3], 256
    $region17: #{tpu_custom_call.1} parent=1 // pred_fallthru
      _
    %v29 = vld [vmem:[#allocation2] sm:$0xff]
    %v30 = vld [vmem:[#allocation2 + $0x8] sm:$0xff]
    %v31 = vld [vmem:[%s1] sm:$0x1]
    %v32 = vld [vmem:[%s2] sm:$0x1]
    %33 = vadd.xlane.f32.xlu0 %v29
    %v34 = vpop.xlane.xlu0 %33
    %35 = vadd.xlane.f32.xlu0 %v30
    %v36 = vpop.xlane.xlu0 %35
    %v37 = vrcp.pop 128.0
    %v38 = vmul.f32 %v34, %v37
    %v39 = vmul.f32 %v36, %v37
    %v40 = vsub.f32 %v29, %v38
    %v41 = vsub.f32 %v30, %v39
    %v42 = vmul.f32 %v40, %v40
    %v43 = vmul.f32 %v41, %v41
    %44 = vadd.xlane.f32.xlu0 %v42
    %v45 = vpop.xlane.xlu0 %44
    %46 = vadd.xlane.f32.xlu0 %v43
    %v47 = vpop.xlane.xlu0 %46
    %v48 = vmul.f32 %v45, %v37
    %v49 = vmul.f32 %v47, %v37
    %v50 = vadd.f32 %v48, 1e-12
    %v51 = vadd.f32 %v49, 1e-12
    %v52 = vrsqrt.pop %v50
    %v53 = vrsqrt.pop %v51
    %v54 = vmul.f32 %v40, %v52
    %v55 = vmul.f32 %v41, %v53
    %v57 = vlaneseq
    %v58 = vshrl.u32 %v57, 7
    %v59 = vsub.s32 0, %v58
    %v60 = vrot.slane %v31, %v59
    %v62 = vmul.f32 %v54, %v60
    %v63 = vmul.f32 %v55, %v60
    %v65 = vlaneseq
    %v66 = vshrl.u32 %v65, 7
    %v67 = vsub.s32 0, %v66
    %v68 = vrot.slane %v32, %v67
    %v70 = vadd.f32 %v62, %v68
    %v71 = vadd.f32 %v63, %v68
    %72 = vst [vmem:[#allocation5] sm:$0xff] %v70
    %73 = vst [vmem:[#allocation5 + $0x8] sm:$0xff] %v71
    // Predicated region
    $region18: #{tpu_custom_call.1} parent=1 // pred_check
      _
    $region19: #{tpu_custom_call.1} parent=1 // pred_check_branch
      %75 = sbr.rel (0) target = $region21
    $region20: #{tpu_custom_call.1} parent=1 // pred_region
      %s77 = ssub.s32 256, 256
      %78 = vsyncadd [#allocation4], %s77
      %s79 = sshll.u32 [#allocation5], 4
      %s80 = int_to_ptr.vmem [resolvable:$true] %s79
      %85 = dma.vmem_to_hbm [thread:$0]  %s80, 256, %s3, [#allocation4], 128, 128, 8
    $region21: #{tpu_custom_call.1} parent=1 // pred_fallthru
      _
    // Predicated region
    $region22: #{tpu_custom_call.1} parent=1 // pred_check
      _
    $region23: #{tpu_custom_call.1} parent=1 // pred_check_branch
      %87 = sbr.rel (0) target = $region25
    $region24: #{tpu_custom_call.1} parent=1 // pred_region
      %88 = dma.done [#allocation4], 256
    $region25: #{tpu_custom_call.1} parent=1 // pred_fallthru
      _
    %89 = vsyncpa [#allocation3], 1
    %90 = vsyncpa [#allocation4], 1

</llo_original>
